<compile_context>
chip_gen: v7x
topology: tpu7x:2x2x1
jax: 0.10.0
libtpu: 0.0.40
codegen_flags: <defaults>
</compile_context>

<pallas_src>
import functools

import jax
import jax.numpy as jnp
from jax.experimental import pallas as pl
from jax.experimental.pallas import tpu as pltpu


def _round_up(a, m):
    return ((a + m - 1) // m) * m


def _sa_kernel(x_ref, w1_ref, b1_ref, w2_ref, b2_ref, o_ref):
    # x_ref : (C, TP)  pixel tile, channels on sublanes, pixels on lanes (native dtype)
    # w1_ref: (C, C)   PyTorch (out, in) layout, cast to x dtype -> h = w1 @ x
    # b1_ref: (C, 1)   f32
    # w2_ref: (C, 1)   f32 ((1, C) PyTorch weight reshaped to a column)
    # b2_ref: (1, 1)   f32 SMEM scalar
    x = x_ref[...]                                      # keep native dtype; no f32 tile copy

    # Conv1x1 (C -> C): MXU matmul, f32 accumulate (bf16 inputs stay bf16 on the MXU).
    h = jnp.dot(w1_ref[...], x, preferred_element_type=jnp.float32)
    h = jnp.maximum(h + b1_ref[...], 0.0)               # bias + ReLU, (C, TP) f32

    # Conv1x1 (C -> 1): VPU multiply + sublane (XLU) reduce, then EUP sigmoid.
    a = jnp.sum(w2_ref[...] * h, axis=0, keepdims=True) + b2_ref[0, 0]   # (1, TP)
    a = jax.nn.sigmoid(a)

    # out = x * y ; the attention row broadcasts over the channel/sublane axis.
    o_ref[...] = (x * a.astype(x.dtype)).astype(o_ref.dtype)


@functools.partial(jax.jit, static_argnames=("tile_bytes",))
def sa_layer(x_nchw, w1, b1, w2, b2, *, tile_bytes=1 << 20):
    """SALayer forward.  x_nchw: (N, C, H, W).  w1: (C, C) [PyTorch (out,in)],
    b1: (C,), w2: (1, C), b2: (1,)."""
    N, C, H, W = x_nchw.shape
    HW = H * W
    itemsize = jnp.dtype(x_nchw.dtype).itemsize

    # Zero-copy reshape to (N, C, H*W): operate on native NCHW, no transposes.
    x = x_nchw.reshape(N, C, HW)

    # ---- pixel-tile selection: sized by bytes per step, not a fixed lane count ----
    max_tp = max(128, (tile_bytes // (C * itemsize)) // 128 * 128)
    if HW <= max_tp:
        if N == 1 and HW >= 256:
            # v7x megacore: keep >= 2 parallel grid steps so both TensorCores get work.
            tp = _round_up(pl.cdiv(HW, 2), 128)
        else:
            tp = HW                          # single full-row tile (block dim == array dim)
    else:
        # Smallest tile count that respects the byte budget, rounded to 128 lanes
        # (keeps the edge-block overhang to <~128 lanes per tile count).  The grid
        # uses cdiv; Pallas clips the edge block's DMA, so no wrapper pad / slice.
        k = pl.cdiv(HW, max_tp)
        tp = _round_up(pl.cdiv(HW, k), 128)
    grid = (N, pl.cdiv(HW, tp))

    # Small parameter operands (tiny resident VMEM blocks / SMEM scalar).
    w1_c = w1.astype(x_nchw.dtype)                   # (C, C): bf16 inputs -> bf16 MXU matmul
    b1_c = b1.astype(jnp.float32).reshape(C, 1)      # (C, 1)
    w2_c = w2.astype(jnp.float32).reshape(C, 1)      # (C, 1)
    b2_s = b2.astype(jnp.float32).reshape(1, 1)      # (1, 1) -> SMEM scalar

    cost = pl.CostEstimate(
        flops=int(N * HW * (2 * C * C + 4 * C + 2)),
        transcendentals=int(N * HW),                  # sigmoid
        bytes_accessed=int(2 * N * C * HW * itemsize + (C * C + 3 * C + 1) * 4),
    )

    out = pl.pallas_call(
        _sa_kernel,
        out_shape=jax.ShapeDtypeStruct((N, C, HW), x_nchw.dtype),
        grid_spec=pltpu.PrefetchScalarGridSpec(
            num_scalar_prefetch=0,
            grid=grid,
            in_specs=[
                pl.BlockSpec((None, C, tp), lambda n, j: (n, 0, j)),   # x tile (C, tp)
                pl.BlockSpec((C, C), lambda n, j: (0, 0)),             # w1
                pl.BlockSpec((C, 1), lambda n, j: (0, 0)),             # b1
                pl.BlockSpec((C, 1), lambda n, j: (0, 0)),             # w2 column
                pl.BlockSpec(memory_space=pltpu.MemorySpace.SMEM),     # b2 scalar
            ],
            out_specs=pl.BlockSpec((None, C, tp), lambda n, j: (n, 0, j)),
        ),
        compiler_params=pltpu.CompilerParams(
            dimension_semantics=("parallel", "parallel"),
            # Explicit guardrail: v5e's scoped default is 16 MiB, v7x physical is
            # 64 MiB; our double-buffered footprint (~4 MiB) fits everywhere.
            vmem_limit_bytes=32 * 1024 * 1024,
        ),
        cost_estimate=cost,
    )(x, w1_c, b1_c, w2_c, b2_s)

    return out.reshape(N, C, H, W)


def _reference(x, w1, b1, w2, b2):
    # Pure-JAX reference matching PyTorch semantics (NCHW, 1x1 convs).
    h = jnp.einsum("nchw,oc->nohw", x, w1) + b1[None, :, None, None]
    h = jnp.maximum(h, 0.0)
    a = jnp.einsum("nchw,oc->nohw", h, w2) + b2[None, :, None, None]
    a = jax.nn.sigmoid(a)  # (N, 1, H, W)
    return x * a


if __name__ == "__main__":
    key = jax.random.PRNGKey(0)
    kx, k1, kb1, k2, kb2 = jax.random.split(key, 5)

    N, C, H, W = 2, 4, 16, 16  # small shapes consistent with the module
    x = jax.random.normal(kx, (N, C, H, W), dtype=jnp.float32)

    # Deterministic synthetic parameters (PyTorch Conv2d 1x1 weights squeezed
    # from (out, in, 1, 1) to (out, in)).
    w1 = jax.random.normal(k1, (C, C), dtype=jnp.float32) * 0.2
    b1 = jax.random.normal(kb1, (C,), dtype=jnp.float32) * 0.1
    w2 = jax.random.normal(k2, (1, C), dtype=jnp.float32) * 0.2
    b2 = jax.random.normal(kb2, (1,), dtype=jnp.float32) * 0.1

    out = sa_layer(x, w1, b1, w2, b2)
    jax.block_until_ready(out)
    ref = _reference(x, w1, b1, w2, b2)
    assert out.shape == x.shape
    assert jnp.allclose(out, ref, atol=1e-5, rtol=1e-5)

    # Ragged multi-tile path (H*W=1600, 4 tiles of 512 lanes, last tile overhangs):
    # exercises the edge-block clipping that replaced the wrapper pad/slice.
    x2 = jax.random.normal(kx, (1, C, 40, 40), dtype=jnp.float32)
    out2 = sa_layer(x2, w1, b1, w2, b2, tile_bytes=8192)
    jax.block_until_ready(out2)
    ref2 = _reference(x2, w1, b1, w2, b2)
    assert jnp.allclose(out2, ref2, atol=1e-5, rtol=1e-5)

    # Single-image path: pixel axis auto-split into 2 tiles (v7x two-TC balance).
    x3 = jax.random.normal(k1, (1, C, 16, 16), dtype=jnp.float32)
    out3 = sa_layer(x3, w1, b1, w2, b2)
    jax.block_until_ready(out3)
    ref3 = _reference(x3, w1, b1, w2, b2)
    assert jnp.allclose(out3, ref3, atol=1e-5, rtol=1e-5)

    print("KERNEL_OK")
</pallas_src>

<mosaic_0001>
module attributes {stable_mosaic.version = 11 : i64} {
  func.func @_sa_kernel(%arg0: i32, %arg1: i32, %arg2: memref<1x4x256xf32, #tpu.memory_space<vmem>>, %arg3: memref<4x4xf32, #tpu.memory_space<vmem>>, %arg4: memref<4x1xf32, #tpu.memory_space<vmem>>, %arg5: memref<4x1xf32, #tpu.memory_space<vmem>>, %arg6: memref<1x1xf32, #tpu.memory_space<smem>>, %arg7: memref<1x4x256xf32, #tpu.memory_space<vmem>>) attributes {dimension_semantics = [#tpu.dimension_semantics<parallel>, #tpu.dimension_semantics<parallel>], iteration_bounds = array<i64: 2, 1>, scalar_prefetch = 0 : i64, scratch_operands = 0 : i64, tpu.core_type = #tpu.core_type<tc>, window_params = [{transform_indices = @transform_0, window_bounds = array<i64: 1, 4, 256>}, {pipeline_mode = #tpu.pipeline_mode<synchronous>, transform_indices = @transform_1, window_bounds = array<i64: 4, 4>}, {pipeline_mode = #tpu.pipeline_mode<synchronous>, transform_indices = @transform_2, window_bounds = array<i64: 4, 1>}, {pipeline_mode = #tpu.pipeline_mode<synchronous>, transform_indices = @transform_3, window_bounds = array<i64: 4, 1>}, {transform_indices = @transform_4, window_bounds = array<i64: 1, 1>}, {transform_indices = @transform_5, window_bounds = array<i64: 1, 4, 256>}]} {
    %c0 = arith.constant 0 : index
    %c0_0 = arith.constant 0 : index
    %c0_1 = arith.constant 0 : index
    %0 = vector.load %arg2[%c0, %c0_0, %c0_1] : memref<1x4x256xf32, #tpu.memory_space<vmem>>, vector<1x4x256xf32>
    %1 = vector.shape_cast %0 : vector<1x4x256xf32> to vector<4x256xf32>
    %c0_2 = arith.constant 0 : index
    %c0_3 = arith.constant 0 : index
    %2 = vector.load %arg3[%c0_2, %c0_3] : memref<4x4xf32, #tpu.memory_space<vmem>>, vector<4x4xf32>
    %cst = arith.constant dense<0.000000e+00> : vector<4x256xf32>
    %3 = tpu.matmul %2, %1, %cst {dimension_numbers = #tpu.dot_dimension_numbers<[1], [0], [0], [1], [0, 0, 1, 1], [], []>} : vector<4x4xf32>, vector<4x256xf32>, vector<4x256xf32> -> vector<4x256xf32>
    %c0_4 = arith.constant 0 : index
    %c0_5 = arith.constant 0 : index
    %4 = vector.load %arg4[%c0_4, %c0_5] : memref<4x1xf32, #tpu.memory_space<vmem>>, vector<4x1xf32>
    %5 = vector.broadcast %4 : vector<4x1xf32> to vector<4x256xf32>
    %6 = arith.addf %3, %5 : vector<4x256xf32>
    %cst_6 = arith.constant 0.000000e+00 : f32
    %7 = vector.broadcast %cst_6 : f32 to vector<4x256xf32>
    %8 = arith.maximumf %6, %7 : vector<4x256xf32>
    %c0_7 = arith.constant 0 : index
    %c0_8 = arith.constant 0 : index
    %9 = vector.load %arg5[%c0_7, %c0_8] : memref<4x1xf32, #tpu.memory_space<vmem>>, vector<4x1xf32>
    %10 = vector.broadcast %9 : vector<4x1xf32> to vector<4x256xf32>
    %11 = arith.mulf %10, %8 : vector<4x256xf32>
    %cst_9 = arith.constant dense<0.000000e+00> : vector<256xf32>
    %12 = vector.multi_reduction <add>, %11, %cst_9 [0] : vector<4x256xf32> to vector<256xf32>
    %13 = vector.shape_cast %12 : vector<256xf32> to vector<1x256xf32>
    %c0_10 = arith.constant 0 : index
    %c0_11 = arith.constant 0 : index
    %14 = memref.load %arg6[%c0_10, %c0_11] : memref<1x1xf32, #tpu.memory_space<smem>>
    %15 = vector.broadcast %14 : f32 to vector<1x256xf32>
    %16 = arith.addf %13, %15 : vector<1x256xf32>
    %17 = arith.negf %16 : vector<1x256xf32>
    %18 = math.exp %17 : vector<1x256xf32>
    %cst_12 = arith.constant 1.000000e+00 : f32
    %19 = vector.broadcast %cst_12 : f32 to vector<1x256xf32>
    %20 = arith.addf %19, %18 : vector<1x256xf32>
    %21 = arith.divf %19, %20 : vector<1x256xf32>
    %22 = vector.broadcast %21 : vector<1x256xf32> to vector<4x256xf32>
    %23 = arith.mulf %1, %22 : vector<4x256xf32>
    %c0_13 = arith.constant 0 : index
    %c0_14 = arith.constant 0 : index
    %c0_15 = arith.constant 0 : index
    %24 = vector.load %arg7[%c0_13, %c0_14, %c0_15] : memref<1x4x256xf32, #tpu.memory_space<vmem>>, vector<1x4x256xf32>
    %25 = vector.shape_cast %24 : vector<1x4x256xf32> to vector<4x256xf32>
    %26 = vector.shape_cast %23 : vector<4x256xf32> to vector<1x4x256xf32>
    tpu.vector_store %arg7[%c0_13, %c0_14, %c0_15], %26 {strides = array<i32>} : memref<1x4x256xf32, #tpu.memory_space<vmem>>, vector<1x4x256xf32>,
    return
  }
  func.func @transform_0(%arg0: i32, %arg1: i32) -> (i32, i32, i32) {
    %c0_i32 = arith.constant 0 : i32
    %c0_i32_0 = arith.constant 0 : i32
    return %arg0, %c0_i32, %arg1 : i32, i32, i32
  }
  func.func @transform_1(%arg0: i32, %arg1: i32) -> (i32, i32) {
    %c0_i32 = arith.constant 0 : i32
    %c0_i32_0 = arith.constant 0 : i32
    %c0_i32_1 = arith.constant 0 : i32
    return %c0_i32, %c0_i32_0 : i32, i32
  }
  func.func @transform_2(%arg0: i32, %arg1: i32) -> (i32, i32) {
    %c0_i32 = arith.constant 0 : i32
    %c0_i32_0 = arith.constant 0 : i32
    %c0_i32_1 = arith.constant 0 : i32
    return %c0_i32, %c0_i32_0 : i32, i32
  }
  func.func @transform_3(%arg0: i32, %arg1: i32) -> (i32, i32) {
    %c0_i32 = arith.constant 0 : i32
    %c0_i32_0 = arith.constant 0 : i32
    %c0_i32_1 = arith.constant 0 : i32
    return %c0_i32, %c0_i32_0 : i32, i32
  }
  func.func @transform_4(%arg0: i32, %arg1: i32) -> (i32, i32) {
    %c0_i32 = arith.constant 0 : i32
    %c0_i32_0 = arith.constant 0 : i32
    %c0_i32_1 = arith.constant 0 : i32
    return %c0_i32, %c0_i32_0 : i32, i32
  }
  func.func @transform_5(%arg0: i32, %arg1: i32) -> (i32, i32, i32) {
    %c0_i32 = arith.constant 0 : i32
    %c0_i32_0 = arith.constant 0 : i32
    return %arg0, %c0_i32, %arg1 : i32, i32, i32
  }
}

</mosaic_0001>

<llo_original>
// kernel: sa_layer.1
$region0: #{sa_layer.1}
  #allocation0 [shape = 'u32[]', space=smem, size = 0x4, offset = 0x4, fixed_abs, tag = 'smem constant byte address 0x4 - core index']
  #allocation1 [shape = 'u32[144,128]{1,0:T(1,128)}', space=vmem, size = 0x12000, scoped, tag = 'internal scratch']
  #allocation2 [shape = 'f32[1,1]{1,0:T(1,128)S(6)}', space=smem, size = 0x200, scoped, tag = 'scoped memory for sa_layer.1']
  %s0 = inlined_call_operand.vmem [shape: f32[2,4,256], index: 0, kind: input, shape index: {}]
  %s1 = inlined_call_operand.vmem [shape: f32[4,4], index: 1, kind: input, shape index: {}]
  %s2 = inlined_call_operand.vmem [shape: f32[4,1], index: 2, kind: input, shape index: {}]
  %s3 = inlined_call_operand.vmem [shape: f32[4,1], index: 3, kind: input, shape index: {}]
  %s4 = inlined_call_operand.<no memory space> [shape: f32[1,1], index: 4, kind: input, shape index: {}]
  %s5 = inlined_call_operand.vmem [shape: f32[2,4,256], index: 5, kind: output, shape index: {}]
  %s6 = sld [smem:[#allocation0]]
  $region53: #{sa_layer.1} parent=0
    _
  %s8 = ssub.s32 1, %s6
  %s9 = scalar_select 0, %s8, %s6
  %10 = sst [smem:[#allocation2]] %s4
  loop: start=0, step=1, limit=4
  $region2: #{sa_layer.1} parent=0 // loop_pre_header
    _
  $region3: #{sa_layer.1} parent=0 // loop_header
    %s12 = sphi 0, %s16
    %p13 = scmp.ge.s32.totalorder %s12, 4
    %s19 = sphi 0, %s31
    %s20 = sphi 0, %s27
    %s21 = sphi 0, %s19
    %s22 = sphi 0, %s20
    %s23 = sphi 0, %s21
    %s24 = sphi 0, %s22
    %s36 = sphi 0, %s38
    %s39 = sphi 0, %s36
    %s40 = sphi 0, %s39
    %s56 = sphi 0, %s40
    %s60 = sphi 0, %s60
    %s62 = sphi 0, %s60
    %s63 = sphi 0, %s62
    %s77 = sphi 0, %s63
    %s81 = sphi 0, %s81
    %s83 = sphi 0, %s81
    %s84 = sphi 0, %s83
    %s98 = sphi 0, %s84
    %s102 = sphi 0, %s102
    %s104 = sphi 0, %s102
    %s105 = sphi 0, %s104
    %s119 = sphi 0, %s105
    %s123 = sphi 0, %s123
    %s125 = sphi 0, %s123
    %s126 = sphi 0, %s125
    %s140 = sphi 0, %s126
    %s148 = sphi 0, %s150
    %s151 = sphi 0, %s148
    %s152 = sphi 0, %s151
    %s168 = sphi 0, %s152
  $region4: #{sa_layer.1} parent=0 // loop_header_branch
    %15 = sbr.rel (%p13) target = $region8
  $region5: #{sa_layer.1} parent=0 // loop_body
    %s17 = ssub.s32 %s12, 1
    %s18 = ssub.s32 %s12, 2
    %s25 = sadd.s32 1, %s20
    %p26 = scmp.ge.s32.totalorder %s25, 1
    %s27 = scalar_select %p26, 0, %s25
    %s28 = sadd.s32 1, %s19
    %s29 = scalar_select %p26, %s28, %s19
    %p30 = scmp.ge.s32.totalorder %s29, 2
    %s31 = scalar_select %p30, 0, %s29
    %s32 = ssub.s32 %s19, %s31
    %s33 = ssub.s32 %s20, %s27
    %s34 = sor.u32 %s32, %s33
    %p35 = scmp.eq.s32.totalorder %s34, 0
    %s37 = sadd.s32 %s36, 1
    %s38 = scalar_select %p35, %s36, %s37
    %p41 = pneg %p35
    %p42 = scmp.eq.s32.totalorder %s12, 1
    %p43 = por %p41, %p42
    %p44 = scmp.ne.s32.totalorder %s36, %s39
    %p45 = scmp.eq.s32.totalorder %s12, 0
    %p46 = por %p44, %p45
    %p47 = scmp.ne.s32.totalorder %s36, %s39
    %p48 = scmp.eq.s32.totalorder %s17, 1
    %p49 = por %p47, %p48
    %p50 = scmp.ne.s32.totalorder %s39, %s40
    %p51 = scmp.eq.s32.totalorder %s17, 0
    %p52 = por %p50, %p51
    %p53 = scmp.ne.s32.totalorder %s39, %s40
    %p54 = scmp.eq.s32.totalorder %s18, 1
    %p55 = por %p53, %p54
    %p57 = scmp.ne.s32.totalorder %s40, %s56
    %p58 = scmp.eq.s32.totalorder %s18, 0
    %p59 = por %p57, %p58
    %s61 = sadd.s32 %s60, 1
    %p64 = scmp.eq.s32.totalorder %s12, 1
    %p65 = scmp.ne.s32.totalorder %s60, %s62
    %p66 = scmp.eq.s32.totalorder %s12, 0
    %p67 = por %p65, %p66
    %p68 = scmp.ne.s32.totalorder %s60, %s62
    %p69 = scmp.eq.s32.totalorder %s17, 1
    %p70 = por %p68, %p69
    %p71 = scmp.ne.s32.totalorder %s62, %s63
    %p72 = scmp.eq.s32.totalorder %s17, 0
    %p73 = por %p71, %p72
    %p74 = scmp.ne.s32.totalorder %s62, %s63
    %p75 = scmp.eq.s32.totalorder %s18, 1
    %p76 = por %p74, %p75
    %p78 = scmp.ne.s32.totalorder %s63, %s77
    %p79 = scmp.eq.s32.totalorder %s18, 0
    %p80 = por %p78, %p79
    %s82 = sadd.s32 %s81, 1
    %p85 = scmp.eq.s32.totalorder %s12, 1
    %p86 = scmp.ne.s32.totalorder %s81, %s83
    %p87 = scmp.eq.s32.totalorder %s12, 0
    %p88 = por %p86, %p87
    %p89 = scmp.ne.s32.totalorder %s81, %s83
    %p90 = scmp.eq.s32.totalorder %s17, 1
    %p91 = por %p89, %p90
    %p92 = scmp.ne.s32.totalorder %s83, %s84
    %p93 = scmp.eq.s32.totalorder %s17, 0
    %p94 = por %p92, %p93
    %p95 = scmp.ne.s32.totalorder %s83, %s84
    %p96 = scmp.eq.s32.totalorder %s18, 1
    %p97 = por %p95, %p96
    %p99 = scmp.ne.s32.totalorder %s84, %s98
    %p100 = scmp.eq.s32.totalorder %s18, 0
    %p101 = por %p99, %p100
    %s103 = sadd.s32 %s102, 1
    %p106 = scmp.eq.s32.totalorder %s12, 1
    %p107 = scmp.ne.s32.totalorder %s102, %s104
    %p108 = scmp.eq.s32.totalorder %s12, 0
    %p109 = por %p107, %p108
    %p110 = scmp.ne.s32.totalorder %s102, %s104
    %p111 = scmp.eq.s32.totalorder %s17, 1
    %p112 = por %p110, %p111
    %p113 = scmp.ne.s32.totalorder %s104, %s105
    %p114 = scmp.eq.s32.totalorder %s17, 0
    %p115 = por %p113, %p114
    %p116 = scmp.ne.s32.totalorder %s104, %s105
    %p117 = scmp.eq.s32.totalorder %s18, 1
    %p118 = por %p116, %p117
    %p120 = scmp.ne.s32.totalorder %s105, %s119
    %p121 = scmp.eq.s32.totalorder %s18, 0
    %p122 = por %p120, %p121
    %s124 = sadd.s32 %s123, 1
    %p127 = scmp.eq.s32.totalorder %s12, 1
    %p128 = scmp.ne.s32.totalorder %s123, %s125
    %p129 = scmp.eq.s32.totalorder %s12, 0
    %p130 = por %p128, %p129
    %p131 = scmp.ne.s32.totalorder %s123, %s125
    %p132 = scmp.eq.s32.totalorder %s17, 1
    %p133 = por %p131, %p132
    %p134 = scmp.ne.s32.totalorder %s125, %s126
    %p135 = scmp.eq.s32.totalorder %s17, 0
    %p136 = por %p134, %p135
    %p137 = scmp.ne.s32.totalorder %s125, %s126
    %p138 = scmp.eq.s32.totalorder %s18, 1
    %p139 = por %p137, %p138
    %p141 = scmp.ne.s32.totalorder %s126, %s140
    %p142 = scmp.eq.s32.totalorder %s18, 0
    %p143 = por %p141, %p142
    %s144 = ssub.s32 %s19, %s31
    %s145 = ssub.s32 %s20, %s27
    %s146 = sor.u32 %s144, %s145
    %p147 = scmp.eq.s32.totalorder %s146, 0
    %s149 = sadd.s32 %s148, 1
    %s150 = scalar_select %p147, %s148, %s149
    %p153 = pneg %p147
    %p154 = scmp.eq.s32.totalorder %s12, 1
    %p155 = por %p153, %p154
    %p156 = scmp.ne.s32.totalorder %s148, %s151
    %p157 = scmp.eq.s32.totalorder %s12, 0
    %p158 = por %p156, %p157
    %p159 = scmp.ne.s32.totalorder %s148, %s151
    %p160 = scmp.eq.s32.totalorder %s17, 1
    %p161 = por %p159, %p160
    %p162 = scmp.ne.s32.totalorder %s151, %s152
    %p163 = scmp.eq.s32.totalorder %s17, 0
    %p164 = por %p162, %p163
    %p165 = scmp.ne.s32.totalorder %s151, %s152
    %p166 = scmp.eq.s32.totalorder %s18, 1
    %p167 = por %p165, %p166
    %p169 = scmp.ne.s32.totalorder %s152, %s168
    %p170 = scmp.eq.s32.totalorder %s18, 0
    %p171 = por %p169, %p170
    %p172 = scmp.le.s32.totalorder 1, %s12
    %p173 = scmp.lt.s32.totalorder %s12, 3
    %p174 = pnand %p172, %p173
    %p175 = pneg %p174
    // Predicated region
    $region9: #{sa_layer.1} parent=5 // pred_check
      _
    $region10: #{sa_layer.1} parent=5 // pred_check_branch
      %177 = sbr.rel (%p174) target = $region12
    $region11: #{sa_layer.1} parent=5 // pred_region
      %s178 = ssub.s32 %s12, 1
      // Predicated region
      $region13: #{sa_layer.1} parent=11 // pred_check
        %p179 = pneg %p73
      $region14: #{sa_layer.1} parent=11 // pred_check_branch
        %181 = sbr.rel (%p179) target = $region16
      $region15: #{sa_layer.1} parent=11 // pred_region
        _
      $region16: #{sa_layer.1} parent=11 // pred_fallthru
        _
      // Predicated region
      $region17: #{sa_layer.1} parent=11 // pred_check
        %p182 = pneg %p94
      $region18: #{sa_layer.1} parent=11 // pred_check_branch
        %184 = sbr.rel (%p182) target = $region20
      $region19: #{sa_layer.1} parent=11 // pred_region
        _
      $region20: #{sa_layer.1} parent=11 // pred_fallthru
        _
      // Predicated region
      $region21: #{sa_layer.1} parent=11 // pred_check
        %p185 = pneg %p115
      $region22: #{sa_layer.1} parent=11 // pred_check_branch
        %187 = sbr.rel (%p185) target = $region24
      $region23: #{sa_layer.1} parent=11 // pred_region
        _
      $region24: #{sa_layer.1} parent=11 // pred_fallthru
        _
      // Predicated region
      $region25: #{sa_layer.1} parent=11 // pred_check
        %p188 = pneg %p136
      $region26: #{sa_layer.1} parent=11 // pred_check_branch
        %190 = sbr.rel (%p188) target = $region28
      $region27: #{sa_layer.1} parent=11 // pred_region
        _
      $region28: #{sa_layer.1} parent=11 // pred_fallthru
        _
    $region12: #{sa_layer.1} parent=5 // pred_fallthru
      _
    %p191 = scmp.lt.s32.totalorder %s12, 2
    // Predicated region
    $region29: #{sa_layer.1} parent=5 // pred_check
      %p192 = pneg %p191
    $region30: #{sa_layer.1} parent=5 // pred_check_branch
      %194 = sbr.rel (%p192) target = $region32
    $region31: #{sa_layer.1} parent=5 // pred_region
      // Predicated region
      $region33: #{sa_layer.1} parent=31 // pred_check
        %p195 = pneg %p46
      $region34: #{sa_layer.1} parent=31 // pred_check_branch
        %197 = sbr.rel (%p195) target = $region36
      $region35: #{sa_layer.1} parent=31 // pred_region
        %s198 = smul.u32 2, %s20
        %p199 = scmp.lt.s32.totalorder %s19, 1
        %s200 = scalar_select %p199, %s19, 1
        %p201 = scmp.lt.s32.totalorder %s198, 1
        %s202 = scalar_select %p201, %s198, 1
        %s203 = smul.addr %s200, 2
        %s204 = sadd.s32 %s202, %s203
        %s205 = smul.addr %s204, 4
        %s206 = scalar_lea.vmem %s0, %s205
        %s207 = smul.u32 2, %s20
      $region36: #{sa_layer.1} parent=31 // pred_fallthru
        _
    $region32: #{sa_layer.1} parent=5 // pred_fallthru
      _
    %p208 = scmp.le.s32.totalorder 1, %s12
    %p209 = scmp.lt.s32.totalorder %s12, 3
    %p210 = pnand %p208, %p209
    %p211 = pneg %p210
    // Predicated region
    $region37: #{sa_layer.1} parent=5 // pred_check
      _
    $region38: #{sa_layer.1} parent=5 // pred_check_branch
      %213 = sbr.rel (%p210) target = $region40
    $region39: #{sa_layer.1} parent=5 // pred_region
      %s214 = ssub.s32 %s12, 1
      %s215 = smul.u32 2, %s22
      %p216 = scmp.lt.s32.totalorder %s21, 1
      %s217 = scalar_select %p216, %s21, 1
      %p218 = scmp.lt.s32.totalorder %s215, 1
      %s219 = scalar_select %p218, %s215, 1
      %s220 = smul.addr %s217, 2
      %s221 = sadd.s32 %s219, %s220
      %s222 = smul.addr %s221, 4
      %s223 = scalar_lea.vmem %s0, %s222
      %p224 = pneg %p52
      %p225 = pneg %p49
      %p226 = pneg %p73
      %p227 = pneg %p70
      %p228 = pneg %p94
      %p229 = pneg %p91
      %p230 = pneg %p115
      %p231 = pneg %p112
      %p232 = pneg %p136
      %p233 = pneg %p133
      %p234 = pneg %p164
      %p235 = pneg %p161
      %s236 = smul.u32 2, %s22
      %p237 = scmp.lt.s32.totalorder %s21, 1
      %s238 = scalar_select %p237, %s21, 1
      %p239 = scmp.lt.s32.totalorder %s236, 1
      %s240 = scalar_select %p239, %s236, 1
      %s241 = smul.addr %s238, 2
      %s242 = sadd.s32 %s240, %s241
      %s243 = smul.addr %s242, 4
      %s244 = scalar_lea.vmem %s5, %s243
      %s245 = smul.u32 2, %s22
      %p246 = scmp.lt.s32.totalorder %s21, 1
      %s247 = scalar_select %p246, %s21, 1
      %p248 = scmp.lt.s32.totalorder %s245, 1
      %s249 = scalar_select %p248, %s245, 1
      %s250 = smul.addr %s247, 2
      %s251 = sadd.s32 %s249, %s250
      %s252 = smul.addr %s251, 4
      %s253 = scalar_lea.vmem %s0, %s252
      %s254 = smul.u32 2, %s22
      %s255 = smul.u32 2, %s22
      %p256 = scmp.lt.s32.totalorder %s21, 1
      %s257 = scalar_select %p256, %s21, 1
      %p258 = scmp.lt.s32.totalorder %s255, 1
      %s259 = scalar_select %p258, %s255, 1
      %s260 = smul.addr %s257, 2
      %s261 = sadd.s32 %s259, %s260
      %s262 = smul.addr %s261, 4
      %s263 = scalar_lea.vmem %s5, %s262
      %s264 = smul.u32 2, %s22
      %v265 = vld [vmem:[%s253] sm:$0xff]
      %v266 = vld [vmem:[%s1] sm:$0xf]
      %v267 = vld [vmem:[%s2] sm:$0xf]
      %269 = vset.pattern.permute.xlu0 0
      %270 = vperm.xlu0 %269, %v267
      %v271 = vpop.permute.xlu0 %270
      %v274 = vcombine.high %v265, %v265
      %vm275 = vcmask 31744
      %v277 = vsel %vm275, %v266, 0
      %vm279 = vcmask 1043456
      %v280 = vsel %vm279, %v265, 0
      %v282 = vsel %vm279, %v274, 0
      %284 = vmatprep.subr.mxu0 %v282
      %285 = vmatpush1.msra.mxu0 %v280
      %286 = vmatprep.subr.mxu0 0.0
      %287 = vmatpush1.msra.mxu0 0.0
      %288 = vmatprep.subr.mxu0 0.0
      %289 = vmatpush1.msra.mxu0 0.0
      %290 = vmatprep.subr.mxu0 0.0
      %291 = vmatpush1.msra.mxu0 0.0
      %292 = vmatprep.subr.mxu0 0.0
      %293 = vmatpush1.msra.mxu0 0.0
      %294 = vmatprep.subr.mxu0 0.0
      %295 = vmatpush1.msra.mxu0 0.0
      %296 = vmatprep.subr.mxu0 0.0
      %297 = vmatpush1.msra.mxu0 0.0
      %298 = vmatprep.subr.mxu0 0.0
      %299 = vmatpush1.msra.mxu0 0.0
      %300 = vmatprep.subr.mxu0 0.0
      %301 = vmatpush1.msra.mxu0 0.0
      %302 = vmatprep.subr.mxu0 0.0
      %303 = vmatpush1.msra.mxu0 0.0
      %304 = vmatprep.subr.mxu0 0.0
      %305 = vmatpush1.msra.mxu0 0.0
      %306 = vmatprep.subr.mxu0 0.0
      %307 = vmatpush1.msra.mxu0 0.0
      %308 = vmatprep.subr.mxu0 0.0
      %309 = vmatpush1.msra.mxu0 0.0
      %310 = vmatprep.subr.mxu0 0.0
      %311 = vmatpush1.msra.mxu0 0.0
      %312 = vmatprep.subr.mxu0 0.0
      %313 = vmatpush1.msra.mxu0 0.0
      %314 = vmatprep.subr.mxu0 0.0
      %315 = vmatpush1.msra.mxu0 0.0
      %316 = vmatprep.subr.mxu0 0.0
      %317 = vmatpush1.msra.mxu0 0.0
      %318 = vmatprep.subr.mxu0 0.0
      %319 = vmatpush1.msra.mxu0 0.0
      %320 = vmatprep.subr.mxu0 0.0
      %321 = vmatpush1.msra.mxu0 0.0
      %322 = vmatprep.subr.mxu0 0.0
      %323 = vmatpush1.msra.mxu0 0.0
      %324 = vmatprep.subr.mxu0 0.0
      %325 = vmatpush1.msra.mxu0 0.0
      %326 = vmatprep.subr.mxu0 0.0
      %327 = vmatpush1.msra.mxu0 0.0
      %328 = vmatprep.subr.mxu0 0.0
      %329 = vmatpush1.msra.mxu0 0.0
      %330 = vmatprep.subr.mxu0 0.0
      %331 = vmatpush1.msra.mxu0 0.0
      %332 = vmatprep.subr.mxu0 0.0
      %333 = vmatpush1.msra.mxu0 0.0
      %334 = vmatprep.subr.mxu0 0.0
      %335 = vmatpush1.msra.mxu0 0.0
      %336 = vmatprep.subr.mxu0 0.0
      %337 = vmatpush1.msra.mxu0 0.0
      %338 = vmatprep.subr.mxu0 0.0
      %339 = vmatpush1.msra.mxu0 0.0
      %340 = vmatprep.subr.mxu0 0.0
      %341 = vmatpush1.msra.mxu0 0.0
      %342 = vmatprep.subr.mxu0 0.0
      %343 = vmatpush1.msra.mxu0 0.0
      %344 = vmatprep.subr.mxu0 0.0
      %345 = vmatpush1.msra.mxu0 0.0
      %346 = vmatprep.subr.mxu0 0.0
      %347 = vmatpush1.msra.mxu0 0.0
      %348 = vmatprep.mubr.f32.mxu0 0.0
      %349 = vmatmul.mubr.f32.gmra.mrb[0].mxu0 %v277
      %v350 = vpop.f32.mrb[0].mxu0
      %v351 = vadd.f32 %v271, %v350
      %v352 = vpop.f32.mrb[0].mxu0
      %v353 = vadd.f32 %v271, %v352
      %354 = vdwg.mxu0
      %v355 = vmax.f32 %v351, 0.0
      %v356 = vmax.f32 %v353, 0.0
      %v357 = vld [vmem:[%s3] sm:$0xf]
      %359 = vset.pattern.permute.xlu0 0
      %360 = vperm.xlu0 %359, %v357
      %v361 = vpop.permute.xlu0 %360
      %v363 = vmul.f32 %v361, %v355
      %v364 = vmul.f32 %v361, %v356
      %v365 = vsel %vm279, %v363, 0.0
      %v366 = vrot.slane %v365, 4
      %v367 = vadd.f32 %v365, %v366
      %v368 = vrot.slane %v367, 2
      %v369 = vadd.f32 %v367, %v368
      %v370 = vrot.slane %v369, 1
      %v371 = vadd.f32 %v369, %v370
      %v372 = vsel %vm279, %v364, 0.0
      %v373 = vrot.slane %v372, 4
      %v374 = vadd.f32 %v372, %v373
      %v375 = vrot.slane %v374, 2
      %v376 = vadd.f32 %v374, %v375
      %v377 = vrot.slane %v376, 1
      %v378 = vadd.f32 %v376, %v377
      %s379 = sld [smem:[#allocation2]]
      %v380 = vstv %s379
      %v381 = vadd.f32 %v371, %v380
      %v382 = vadd.f32 %v378, %v380
      %v383 = vxor.u32 %v381, 2147483648
      %v384 = vxor.u32 %v382, 2147483648
      %v385 = vmul.f32 %v383, 1.442695
      %v386 = vpow.pop %v385
      %v387 = vmul.f32 %v384, 1.442695
      %v388 = vpow.pop %v387
      %v389 = vadd.f32 %v386, 1.0
      %v390 = vadd.f32 %v388, 1.0
      %v391 = vrcp.pop %v389
      %v392 = vmul.f32 1.0, %v391
      %v393 = vrcp.pop %v390
      %v394 = vmul.f32 1.0, %v393
      %v397 = vcombine.low %v392, %v394
      %v399 = vmul.f32 %v265, %v397
      %400 = vst [vmem:[%s263] sm:$0xff] %v399
      %s401 = smul.u32 2, %s22
      %p402 = scmp.lt.s32.totalorder %s21, 1
      %s403 = scalar_select %p402, %s21, 1
      %p404 = scmp.lt.s32.totalorder %s401, 1
      %s405 = scalar_select %p404, %s401, 1
      %s406 = smul.addr %s403, 2
      %s407 = sadd.s32 %s405, %s406
      %s408 = smul.addr %s407, 4
      %s409 = scalar_lea.vmem %s5, %s408
      // Predicated region
      $region41: #{sa_layer.1} parent=39 // pred_check
        %p410 = pneg %p161
      $region42: #{sa_layer.1} parent=39 // pred_check_branch
        %412 = sbr.rel (%p410) target = $region44
      $region43: #{sa_layer.1} parent=39 // pred_region
        %s413 = smul.u32 2, %s22
      $region44: #{sa_layer.1} parent=39 // pred_fallthru
        _
    $region40: #{sa_layer.1} parent=5 // pred_fallthru
      _
    %p414 = scmp.le.s32.totalorder 2, %s12
    // Predicated region
    $region45: #{sa_layer.1} parent=5 // pred_check
      %p415 = pneg %p414
    $region46: #{sa_layer.1} parent=5 // pred_check_branch
      %417 = sbr.rel (%p415) target = $region48
    $region47: #{sa_layer.1} parent=5 // pred_region
      %s418 = ssub.s32 %s12, 2
      // Predicated region
      $region49: #{sa_layer.1} parent=47 // pred_check
        %p419 = pneg %p167
      $region50: #{sa_layer.1} parent=47 // pred_check_branch
        %421 = sbr.rel (%p419) target = $region52
      $region51: #{sa_layer.1} parent=47 // pred_region
        %s422 = smul.u32 2, %s24
        %p423 = scmp.lt.s32.totalorder %s23, 1
        %s424 = scalar_select %p423, %s23, 1
        %p425 = scmp.lt.s32.totalorder %s422, 1
        %s426 = scalar_select %p425, %s422, 1
        %s427 = smul.addr %s424, 2
        %s428 = sadd.s32 %s426, %s427
        %s429 = smul.addr %s428, 4
        %s430 = scalar_lea.vmem %s5, %s429
      $region52: #{sa_layer.1} parent=47 // pred_fallthru
        _
    $region48: #{sa_layer.1} parent=5 // pred_fallthru
      _
  $region6: #{sa_layer.1} parent=0 // loop_footer
    %s16 = sadd.s32 1, %s12
  $region7: #{sa_layer.1} parent=0 // loop_footer_branch
    %11 = sbr.rel target = $region3
  $region8: #{sa_layer.1} parent=0 // loop_exit
    _

</llo_original>
